<compile_context>
chip_gen: v5e
topology: v5e:2x2
jax: 0.10.0
libtpu: 0.0.40
codegen_flags: <defaults>
</compile_context>

<pallas_src>
import jax
import jax.numpy as jnp
from jax.experimental import pallas as pl
from jax.experimental.pallas import tpu as pltpu


def _round_up(x: int, m: int) -> int:
    return (x + m - 1) // m * m


def edge_linear_kernel(x_ref, w_ref, b_ref, o_ref):
    """One edge tile of EdgeApplyModule's fused Linear.

    x_ref: (TB, 4F)    bf16  concatenated [h_src | h_edge | ts_enc | h_dst]
    w_ref: (4F, OUT_P) bf16  Linear weight (torch W.T), zero-padded cols
    b_ref: (1,  OUT_P) f32   bias, zero-padded
    o_ref: (TB, OUT_P) f32
    """
    acc = jnp.dot(x_ref[...], w_ref[...], preferred_element_type=jnp.float32)
    o_ref[...] = acc + b_ref[...]


def edge_apply_forward(node_h, edge_h, ts_enc, src, dst, w, b,
                       *, edge_block=128, compute_dtype=jnp.bfloat16):
    """EdgeApplyModule.forward.

    node_h : (N, F)  node features 'h'
    edge_h : (E, F)  edge features 'h'
    ts_enc : (E, F)  edge time encodings
    src/dst: (E,)    int32 endpoint indices (DGL edge batch)
    w      : (4F, OUT)  Linear weight, pre-transposed (torch W.T)
    b      : (OUT,)     Linear bias
    returns: (E, OUT) f32
    """
    E, F = edge_h.shape
    K = 4 * F
    OUT = w.shape[1]

    # --- DGL edge-batching glue (index gather, not dense one-hot matmuls) ---
    h_src = jnp.take(node_h, src, axis=0)                     # (E, F)
    h_dst = jnp.take(node_h, dst, axis=0)                     # (E, F)

    # --- the module's concat, built once -> single fused K=4F matmul ---
    x = jnp.concatenate([h_src, edge_h, ts_enc, h_dst], axis=1)  # (E, 4F)

    # --- pad: edge rows to the tile, OUT to a lane-dense multiple of 128 ---
    OUT_P = _round_up(OUT, 128)
    TB = min(edge_block, _round_up(E, 8))
    E_P = _round_up(E, TB)

    x_p = jnp.zeros((E_P, K), compute_dtype).at[:E].set(x.astype(compute_dtype))
    w_p = jnp.zeros((K, OUT_P), compute_dtype).at[:, :OUT].set(
        w.astype(compute_dtype))
    b_p = jnp.zeros((1, OUT_P), jnp.float32).at[0, :OUT].set(
        b.astype(jnp.float32))

    grid = (E_P // TB,)
    flops = 2 * E_P * K * OUT_P
    bytes_accessed = (x_p.size * x_p.dtype.itemsize
                      + w_p.size * w_p.dtype.itemsize
                      + b_p.size * 4
                      + E_P * OUT_P * 4)

    out_p = pl.pallas_call(
        edge_linear_kernel,
        out_shape=jax.ShapeDtypeStruct((E_P, OUT_P), jnp.float32),
        grid=grid,
        in_specs=[
            pl.BlockSpec((TB, K), lambda i: (i, 0)),       # edge tile (pipelined)
            pl.BlockSpec((K, OUT_P), lambda i: (0, 0)),    # weight, VMEM-resident
            pl.BlockSpec((1, OUT_P), lambda i: (0, 0)),    # bias, VMEM-resident
        ],
        out_specs=pl.BlockSpec((TB, OUT_P), lambda i: (i, 0)),
        compiler_params=pltpu.CompilerParams(
            dimension_semantics=("parallel",),             # v7x: 2 TCs split edges
            vmem_limit_bytes=64 * 1024 * 1024),
        cost_estimate=pl.CostEstimate(flops=flops, transcendentals=0,
                                      bytes_accessed=bytes_accessed),
    )(x_p, w_p, b_p)

    return out_p[:E, :OUT]


def reference_forward(node_h, edge_h, ts_enc, src, dst, w, b):
    """Pure-JAX f32 reference mirroring the torch/DGL module."""
    x = jnp.concatenate([node_h[src], edge_h, ts_enc, node_h[dst]], axis=1)
    return x @ w + b


if __name__ == "__main__":
    N, E, F = 64, 512, 16
    OUT = F  # EdgeApplyModule's Linear(in_feats*4, out_feats); repo uses OUT == F

    key = jax.random.PRNGKey(0)
    k_nh, k_eh, k_ts, k_src, k_dst, k_w, k_b = jax.random.split(key, 7)

    node_h = jax.random.normal(k_nh, (N, F), dtype=jnp.float32)
    edge_h = jax.random.normal(k_eh, (E, F), dtype=jnp.float32)
    ts_enc = jax.random.normal(k_ts, (E, F), dtype=jnp.float32)
    src = jax.random.randint(k_src, (E,), 0, N, dtype=jnp.int32)
    dst = jax.random.randint(k_dst, (E,), 0, N, dtype=jnp.int32)

    # Torch-style Linear init, stored pre-transposed as (in, out) = W.T
    bound = 1.0 / jnp.sqrt(4.0 * F)
    w = jax.random.uniform(k_w, (4 * F, OUT), jnp.float32, -bound, bound)
    b = jax.random.uniform(k_b, (OUT,), jnp.float32, -bound, bound)

    h_edge = edge_apply_forward(node_h, edge_h, ts_enc, src, dst, w, b)
    jax.block_until_ready(h_edge)

    # Exact-path check: same bf16-in / f32-accumulate math as the kernel.
    x_cat = jnp.concatenate([node_h[src], edge_h, ts_enc, node_h[dst]], axis=1)
    ref_bf16 = jnp.dot(x_cat.astype(jnp.bfloat16), w.astype(jnp.bfloat16),
                       preferred_element_type=jnp.float32) + b
    assert jnp.allclose(h_edge, ref_bf16, atol=1e-4, rtol=1e-4), "bf16-path mismatch"

    # Numerical check against the full-f32 torch-equivalent reference.
    ref_f32 = reference_forward(node_h, edge_h, ts_enc, src, dst, w, b)
    assert jnp.allclose(h_edge, ref_f32, atol=3e-2, rtol=3e-2), "f32 reference mismatch"

    print("KERNEL_OK")
</pallas_src>

<mosaic_0001>
module attributes {stable_mosaic.version = 11 : i64} {
  func.func @edge_linear_kernel(%arg0: i32, %arg1: memref<128x64xbf16, #tpu.memory_space<vmem>>, %arg2: memref<64x128xbf16, #tpu.memory_space<vmem>>, %arg3: memref<1x128xf32, #tpu.memory_space<vmem>>, %arg4: memref<128x128xf32, #tpu.memory_space<vmem>>) attributes {dimension_semantics = [#tpu.dimension_semantics<parallel>], iteration_bounds = array<i64: 4>, scalar_prefetch = 0 : i64, scratch_operands = 0 : i64, tpu.core_type = #tpu.core_type<tc>, window_params = [{transform_indices = @transform_0, window_bounds = array<i64: 128, 64>}, {pipeline_mode = #tpu.pipeline_mode<synchronous>, transform_indices = @transform_1, window_bounds = array<i64: 64, 128>}, {pipeline_mode = #tpu.pipeline_mode<synchronous>, transform_indices = @transform_2, window_bounds = array<i64: 1, 128>}, {transform_indices = @transform_3, window_bounds = array<i64: 128, 128>}]} {
    %c0 = arith.constant 0 : index
    %c0_0 = arith.constant 0 : index
    %0 = vector.load %arg1[%c0, %c0_0] : memref<128x64xbf16, #tpu.memory_space<vmem>>, vector<128x64xbf16>
    %c0_1 = arith.constant 0 : index
    %c0_2 = arith.constant 0 : index
    %1 = vector.load %arg2[%c0_1, %c0_2] : memref<64x128xbf16, #tpu.memory_space<vmem>>, vector<64x128xbf16>
    %cst = arith.constant dense<0.000000e+00> : vector<128x128xf32>
    %2 = tpu.matmul %0, %1, %cst {dimension_numbers = #tpu.dot_dimension_numbers<[1], [0], [0], [1], [0, 0, 1, 1], [], []>} : vector<128x64xbf16>, vector<64x128xbf16>, vector<128x128xf32> -> vector<128x128xf32>
    %c0_3 = arith.constant 0 : index
    %c0_4 = arith.constant 0 : index
    %3 = vector.load %arg3[%c0_3, %c0_4] : memref<1x128xf32, #tpu.memory_space<vmem>>, vector<1x128xf32>
    %4 = vector.broadcast %3 : vector<1x128xf32> to vector<128x128xf32>
    %5 = arith.addf %2, %4 : vector<128x128xf32>
    %c0_5 = arith.constant 0 : index
    %c0_6 = arith.constant 0 : index
    %6 = vector.load %arg4[%c0_5, %c0_6] : memref<128x128xf32, #tpu.memory_space<vmem>>, vector<128x128xf32>
    tpu.vector_store %arg4[%c0_5, %c0_6], %5 {strides = array<i32>} : memref<128x128xf32, #tpu.memory_space<vmem>>, vector<128x128xf32>,
    return
  }
  func.func @transform_0(%arg0: i32) -> (i32, i32) {
    %c0_i32 = arith.constant 0 : i32
    %c0_i32_0 = arith.constant 0 : i32
    return %arg0, %c0_i32 : i32, i32
  }
  func.func @transform_1(%arg0: i32) -> (i32, i32) {
    %c0_i32 = arith.constant 0 : i32
    %c0_i32_0 = arith.constant 0 : i32
    %c0_i32_1 = arith.constant 0 : i32
    return %c0_i32, %c0_i32_0 : i32, i32
  }
  func.func @transform_2(%arg0: i32) -> (i32, i32) {
    %c0_i32 = arith.constant 0 : i32
    %c0_i32_0 = arith.constant 0 : i32
    %c0_i32_1 = arith.constant 0 : i32
    return %c0_i32, %c0_i32_0 : i32, i32
  }
  func.func @transform_3(%arg0: i32) -> (i32, i32) {
    %c0_i32 = arith.constant 0 : i32
    %c0_i32_0 = arith.constant 0 : i32
    return %arg0, %c0_i32 : i32, i32
  }
}

</mosaic_0001>

<llo_original>
// kernel: tpu_custom_call.1
$region0: #{tpu_custom_call.1}
  #allocation0 [shape = 'u32[]', space=smem, size = 0x4, offset = 0x4, fixed_abs, tag = 'smem constant byte address 0x4 - core index']
  #allocation1 [shape = 'u32[72,128]{1,0:T(1,128)}', space=vmem, size = 0x9000, scoped, tag = 'internal scratch']
  %s0 = inlined_call_operand.vmem [shape: bf16[512,64], index: 0, kind: input, shape index: {}]
  %s1 = inlined_call_operand.vmem [shape: bf16[64,128], index: 1, kind: input, shape index: {}]
  %s2 = inlined_call_operand.vmem [shape: f32[1,128], index: 2, kind: input, shape index: {}]
  %s3 = inlined_call_operand.hbm [shape: f32[512,128], index: 3, kind: output, shape index: {}]
  %s4 = sld [smem:[#allocation0]]
  $region45: #{tpu_custom_call.1} parent=0
    _
  %s6 = ssub.s32 1, %s4
  %s7 = scalar_select 0, %s6, %s4
  $region1: #{tpu_custom_call.1} parent=0
    #allocation2 [shape = 'u8[131072]{0}', space=vmem, size = 0x20000, scoped, tag = 'output window, operand 0']
    #allocation3 [shape = 's32[2]{0}', space=sflag, size = 0x8, scoped, tag = 'scoped memory for tpu_custom_call.1']
    %8 = vsyncpa [#allocation3], 0
    %s9 = scalar_lea.sflag [#allocation3], 1
    %10 = vsyncpa %s9, 0
    loop: start=0, step=1, limit=6
    $region2: #{tpu_custom_call.1} parent=1 // loop_pre_header
      _
    $region3: #{tpu_custom_call.1} parent=1 // loop_header
      %s12 = sphi 0, %s16
      %p13 = scmp.ge.s32.totalorder %s12, 6
      %s22 = sphi 0, %s24
      %s25 = sphi 0, %s22
      %s26 = sphi 0, %s25
      %s42 = sphi 0, %s26
      %s46 = sphi 0, %s46
      %s48 = sphi 0, %s46
      %s49 = sphi 0, %s48
      %s63 = sphi 0, %s49
      %s67 = sphi 0, %s67
      %s69 = sphi 0, %s67
      %s70 = sphi 0, %s69
      %s84 = sphi 0, %s70
      %s90 = sphi 0, %s92
      %s93 = sphi 0, %s90
      %s94 = sphi 0, %s93
      %s110 = sphi 0, %s94
    $region4: #{tpu_custom_call.1} parent=1 // loop_header_branch
      %15 = sbr.rel (%p13) target = $region8
    $region5: #{tpu_custom_call.1} parent=1 // loop_body
      %s17 = ssub.s32 %s12, 1
      %s18 = ssub.s32 %s12, 2
      %s19 = sadd.s32 %s12, 1
      %s20 = ssub.s32 %s12, %s19
      %p21 = scmp.eq.s32.totalorder %s20, 0
      %s23 = sadd.s32 %s22, 1
      %s24 = scalar_select %p21, %s22, %s23
      %p27 = pneg %p21
      %p28 = scmp.eq.s32.totalorder %s12, 3
      %p29 = por %p27, %p28
      %p30 = scmp.ne.s32.totalorder %s22, %s25
      %p31 = scmp.eq.s32.totalorder %s12, 0
      %p32 = por %p30, %p31
      %p33 = scmp.ne.s32.totalorder %s22, %s25
      %p34 = scmp.eq.s32.totalorder %s17, 3
      %p35 = por %p33, %p34
      %p36 = scmp.ne.s32.totalorder %s25, %s26
      %p37 = scmp.eq.s32.totalorder %s17, 0
      %p38 = por %p36, %p37
      %p39 = scmp.ne.s32.totalorder %s25, %s26
      %p40 = scmp.eq.s32.totalorder %s18, 3
      %p41 = por %p39, %p40
      %p43 = scmp.ne.s32.totalorder %s26, %s42
      %p44 = scmp.eq.s32.totalorder %s18, 0
      %p45 = por %p43, %p44
      %s47 = sadd.s32 %s46, 1
      %p50 = scmp.eq.s32.totalorder %s12, 3
      %p51 = scmp.ne.s32.totalorder %s46, %s48
      %p52 = scmp.eq.s32.totalorder %s12, 0
      %p53 = por %p51, %p52
      %p54 = scmp.ne.s32.totalorder %s46, %s48
      %p55 = scmp.eq.s32.totalorder %s17, 3
      %p56 = por %p54, %p55
      %p57 = scmp.ne.s32.totalorder %s48, %s49
      %p58 = scmp.eq.s32.totalorder %s17, 0
      %p59 = por %p57, %p58
      %p60 = scmp.ne.s32.totalorder %s48, %s49
      %p61 = scmp.eq.s32.totalorder %s18, 3
      %p62 = por %p60, %p61
      %p64 = scmp.ne.s32.totalorder %s49, %s63
      %p65 = scmp.eq.s32.totalorder %s18, 0
      %p66 = por %p64, %p65
      %s68 = sadd.s32 %s67, 1
      %p71 = scmp.eq.s32.totalorder %s12, 3
      %p72 = scmp.ne.s32.totalorder %s67, %s69
      %p73 = scmp.eq.s32.totalorder %s12, 0
      %p74 = por %p72, %p73
      %p75 = scmp.ne.s32.totalorder %s67, %s69
      %p76 = scmp.eq.s32.totalorder %s17, 3
      %p77 = por %p75, %p76
      %p78 = scmp.ne.s32.totalorder %s69, %s70
      %p79 = scmp.eq.s32.totalorder %s17, 0
      %p80 = por %p78, %p79
      %p81 = scmp.ne.s32.totalorder %s69, %s70
      %p82 = scmp.eq.s32.totalorder %s18, 3
      %p83 = por %p81, %p82
      %p85 = scmp.ne.s32.totalorder %s70, %s84
      %p86 = scmp.eq.s32.totalorder %s18, 0
      %p87 = por %p85, %p86
      %s88 = ssub.s32 %s12, %s19
      %p89 = scmp.eq.s32.totalorder %s88, 0
      %s91 = sadd.s32 %s90, 1
      %s92 = scalar_select %p89, %s90, %s91
      %p95 = pneg %p89
      %p96 = scmp.eq.s32.totalorder %s12, 3
      %p97 = por %p95, %p96
      %p98 = scmp.ne.s32.totalorder %s90, %s93
      %p99 = scmp.eq.s32.totalorder %s12, 0
      %p100 = por %p98, %p99
      %p101 = scmp.ne.s32.totalorder %s90, %s93
      %p102 = scmp.eq.s32.totalorder %s17, 3
      %p103 = por %p101, %p102
      %p104 = scmp.ne.s32.totalorder %s93, %s94
      %p105 = scmp.eq.s32.totalorder %s17, 0
      %p106 = por %p104, %p105
      %p107 = scmp.ne.s32.totalorder %s93, %s94
      %p108 = scmp.eq.s32.totalorder %s18, 3
      %p109 = por %p107, %p108
      %p111 = scmp.ne.s32.totalorder %s94, %s110
      %p112 = scmp.eq.s32.totalorder %s18, 0
      %p113 = por %p111, %p112
      %p114 = scmp.le.s32.totalorder 1, %s12
      %p115 = scmp.lt.s32.totalorder %s12, 5
      %p116 = pnand %p114, %p115
      %p117 = pneg %p116
      // Predicated region
      $region9: #{tpu_custom_call.1} parent=5 // pred_check
        _
      $region10: #{tpu_custom_call.1} parent=5 // pred_check_branch
        %119 = sbr.rel (%p116) target = $region12
      $region11: #{tpu_custom_call.1} parent=5 // pred_region
        %s120 = ssub.s32 %s12, 1
        // Predicated region
        $region13: #{tpu_custom_call.1} parent=11 // pred_check
          %p121 = pneg %p59
        $region14: #{tpu_custom_call.1} parent=11 // pred_check_branch
          %123 = sbr.rel (%p121) target = $region16
        $region15: #{tpu_custom_call.1} parent=11 // pred_region
          _
        $region16: #{tpu_custom_call.1} parent=11 // pred_fallthru
          _
        // Predicated region
        $region17: #{tpu_custom_call.1} parent=11 // pred_check
          %p124 = pneg %p80
        $region18: #{tpu_custom_call.1} parent=11 // pred_check_branch
          %126 = sbr.rel (%p124) target = $region20
        $region19: #{tpu_custom_call.1} parent=11 // pred_region
          _
        $region20: #{tpu_custom_call.1} parent=11 // pred_fallthru
          _
      $region12: #{tpu_custom_call.1} parent=5 // pred_fallthru
        _
      %p127 = scmp.lt.s32.totalorder %s12, 4
      // Predicated region
      $region21: #{tpu_custom_call.1} parent=5 // pred_check
        %p128 = pneg %p127
      $region22: #{tpu_custom_call.1} parent=5 // pred_check_branch
        %130 = sbr.rel (%p128) target = $region24
      $region23: #{tpu_custom_call.1} parent=5 // pred_region
        // Predicated region
        $region25: #{tpu_custom_call.1} parent=23 // pred_check
          %p131 = pneg %p32
        $region26: #{tpu_custom_call.1} parent=23 // pred_check_branch
          %133 = sbr.rel (%p131) target = $region28
        $region27: #{tpu_custom_call.1} parent=23 // pred_region
          %s134 = smul.u32 16, %s12
          %p135 = scmp.lt.s32.totalorder %s134, 63
          %s136 = scalar_select %p135, %s134, 63
          %s137 = smul.addr %s136, 4
          %s138 = scalar_lea.vmem %s0, %s137
          %s139 = smul.u32 16, %s12
        $region28: #{tpu_custom_call.1} parent=23 // pred_fallthru
          _
      $region24: #{tpu_custom_call.1} parent=5 // pred_fallthru
        _
      %p140 = scmp.le.s32.totalorder 1, %s12
      %p141 = scmp.lt.s32.totalorder %s12, 5
      %p142 = pnand %p140, %p141
      %p143 = pneg %p142
      // Predicated region
      $region29: #{tpu_custom_call.1} parent=5 // pred_check
        _
      $region30: #{tpu_custom_call.1} parent=5 // pred_check_branch
        %145 = sbr.rel (%p142) target = $region32
      $region31: #{tpu_custom_call.1} parent=5 // pred_region
        %s146 = ssub.s32 %s12, 1
        %s147 = smul.u32 16, %s17
        %p148 = scmp.lt.s32.totalorder %s147, 63
        %s149 = scalar_select %p148, %s147, 63
        %s150 = smul.addr %s149, 4
        %s151 = scalar_lea.vmem %s0, %s150
        %p152 = pneg %p38
        %p153 = pneg %p35
        %p154 = pneg %p59
        %p155 = pneg %p56
        %p156 = pneg %p80
        %p157 = pneg %p77
        %p158 = pneg %p106
        %p159 = pneg %p103
        %s160 = sand.u32 %s93, 1
        %s161 = scalar_lea.sflag [#allocation3], %s160
        %s162 = sand.u32 %s93, 1
        %s163 = smul.addr %s162, 128
        %s164 = scalar_lea.vmem [#allocation2], %s163
        %s165 = smul.u32 16, %s17
        %p166 = scmp.lt.s32.totalorder %s165, 63
        %s167 = scalar_select %p166, %s165, 63
        %s168 = smul.addr %s167, 4
        %s169 = scalar_lea.vmem %s0, %s168
        %s170 = smul.u32 16, %s17
        %s171 = smul.u32 16, %s17
        %v173 = vld [vmem:[%s169] sm:$0xf]
        %v174 = vld [vmem:[%s169 + $0x4] sm:$0xf]
        %v175 = vld [vmem:[%s169 + $0x8] sm:$0xf]
        %v176 = vld [vmem:[%s169 + $0xc] sm:$0xf]
        %v177 = vld [vmem:[%s169 + $0x10] sm:$0xf]
        %v178 = vld [vmem:[%s169 + $0x14] sm:$0xf]
        %v179 = vld [vmem:[%s169 + $0x18] sm:$0xf]
        %v180 = vld [vmem:[%s169 + $0x1c] sm:$0xf]
        %v181 = vld [vmem:[%s169 + $0x20] sm:$0xf]
        %v182 = vld [vmem:[%s169 + $0x24] sm:$0xf]
        %v183 = vld [vmem:[%s169 + $0x28] sm:$0xf]
        %v184 = vld [vmem:[%s169 + $0x2c] sm:$0xf]
        %v185 = vld [vmem:[%s169 + $0x30] sm:$0xf]
        %v186 = vld [vmem:[%s169 + $0x34] sm:$0xf]
        %v187 = vld [vmem:[%s169 + $0x38] sm:$0xf]
        %v188 = vld [vmem:[%s169 + $0x3c] sm:$0xf]
        %v189 = vld [vmem:[%s1] sm:$0xf]
        %v190 = vld [vmem:[%s1 + $0x4] sm:$0xf]
        %v191 = vld [vmem:[%s1 + $0x8] sm:$0xf]
        %v192 = vld [vmem:[%s1 + $0xc] sm:$0xf]
        %v193 = vld [vmem:[%s1 + $0x10] sm:$0xf]
        %v194 = vld [vmem:[%s1 + $0x14] sm:$0xf]
        %v195 = vld [vmem:[%s1 + $0x18] sm:$0xf]
        %v196 = vld [vmem:[%s1 + $0x1c] sm:$0xf]
        %v197 = vld [vmem:[%s2] sm:$0x1]
        %v199 = vperm.slane %v197, 0
        %v217 = vunpack.c.l.b16 %v173
        %v218 = vunpack.c.l.b16 %v174
        %v219 = vunpack.c.l.b16 %v175
        %v220 = vunpack.c.l.b16 %v176
        %v221 = vunpack.c.l.b16 %v177
        %v222 = vunpack.c.l.b16 %v178
        %v223 = vunpack.c.l.b16 %v179
        %v224 = vunpack.c.l.b16 %v180
        %v225 = vunpack.c.l.b16 %v181
        %v226 = vunpack.c.l.b16 %v182
        %v227 = vunpack.c.l.b16 %v183
        %v228 = vunpack.c.l.b16 %v184
        %v229 = vunpack.c.l.b16 %v185
        %v230 = vunpack.c.l.b16 %v186
        %v231 = vunpack.c.l.b16 %v187
        %v232 = vunpack.c.l.b16 %v188
        %v233 = vpack.c.b16 %v218, %v217
        %v234 = vpack.c.b16 %v220, %v219
        %v235 = vpack.c.b16 %v222, %v221
        %v236 = vpack.c.b16 %v224, %v223
        %v237 = vpack.c.b16 %v226, %v225
        %v238 = vpack.c.b16 %v228, %v227
        %v239 = vpack.c.b16 %v230, %v229
        %v240 = vpack.c.b16 %v232, %v231
        %v249 = vunpack.c.l.b16 %v189
        %v250 = vunpack.c.l.b16 %v190
        %v251 = vunpack.c.l.b16 %v191
        %v252 = vunpack.c.l.b16 %v192
        %v253 = vunpack.c.l.b16 %v193
        %v254 = vunpack.c.l.b16 %v194
        %v255 = vunpack.c.l.b16 %v195
        %v256 = vunpack.c.l.b16 %v196
        %v257 = vpack.c.b16 %v250, %v249
        %v258 = vpack.c.b16 %v252, %v251
        %v259 = vpack.c.b16 %v254, %v253
        %v260 = vpack.c.b16 %v256, %v255
        %vm265 = vcmask 523264
        %v267 = vsel %vm265, %v233, 0
        %v270 = vsel %vm265, %v234, 0
        %v273 = vsel %vm265, %v235, 0
        %v276 = vsel %vm265, %v236, 0
        %v279 = vsel %vm265, %v237, 0
        %v282 = vsel %vm265, %v238, 0
        %v285 = vsel %vm265, %v239, 0
        %v288 = vsel %vm265, %v240, 0
        %290 = vmatpush.bf16.msra.mxu0 0
        %291 = vmatpush.bf16.msra.mxu0 0
        %292 = vmatpush.bf16.msra.mxu0 0
        %293 = vmatpush.bf16.msra.mxu0 0
        %294 = vmatpush.bf16.msra.mxu0 %v260
        %295 = vmatpush.bf16.msra.mxu0 %v259
        %296 = vmatpush.bf16.msra.mxu0 %v258
        %297 = vmatpush.bf16.msra.mxu0 %v257
        %298 = vmatmul.bf16.gmra.mxu0 %v267
        %v299 = vpop.f32.mrf.mxu0
        %v300 = vadd.f32 %v199, %v299
        %v301 = vpop.f32.mrf.mxu0
        %v302 = vadd.f32 %v199, %v301
        %303 = vmatmul.bf16.gmra.mxu0 %v270
        %v304 = vpop.f32.mrf.mxu0
        %v305 = vadd.f32 %v199, %v304
        %v306 = vpop.f32.mrf.mxu0
        %v307 = vadd.f32 %v199, %v306
        %308 = vmatmul.bf16.gmra.mxu0 %v273
        %v309 = vpop.f32.mrf.mxu0
        %v310 = vadd.f32 %v199, %v309
        %v311 = vpop.f32.mrf.mxu0
        %v312 = vadd.f32 %v199, %v311
        %313 = vmatmul.bf16.gmra.mxu0 %v276
        %v314 = vpop.f32.mrf.mxu0
        %v315 = vadd.f32 %v199, %v314
        %v316 = vpop.f32.mrf.mxu0
        %v317 = vadd.f32 %v199, %v316
        %318 = vmatmul.bf16.gmra.mxu0 %v279
        %v319 = vpop.f32.mrf.mxu0
        %v320 = vadd.f32 %v199, %v319
        %v321 = vpop.f32.mrf.mxu0
        %v322 = vadd.f32 %v199, %v321
        %323 = vmatmul.bf16.gmra.mxu0 %v282
        %v324 = vpop.f32.mrf.mxu0
        %v325 = vadd.f32 %v199, %v324
        %v326 = vpop.f32.mrf.mxu0
        %v327 = vadd.f32 %v199, %v326
        %328 = vmatmul.bf16.gmra.mxu0 %v285
        %v329 = vpop.f32.mrf.mxu0
        %v330 = vadd.f32 %v199, %v329
        %v331 = vpop.f32.mrf.mxu0
        %v332 = vadd.f32 %v199, %v331
        %333 = vmatmul.bf16.gmra.mxu0 %v288
        %v334 = vpop.f32.mrf.mxu0
        %v335 = vadd.f32 %v199, %v334
        %v336 = vpop.f32.mrf.mxu0
        %v337 = vadd.f32 %v199, %v336
        %338 = vdwg.mxu0
        %339 = vst [vmem:[%s164] sm:$0xff] %v300
        %340 = vst [vmem:[%s164 + $0x8] sm:$0xff] %v302
        %341 = vst [vmem:[%s164 + $0x10] sm:$0xff] %v305
        %342 = vst [vmem:[%s164 + $0x18] sm:$0xff] %v307
        %343 = vst [vmem:[%s164 + $0x20] sm:$0xff] %v310
        %344 = vst [vmem:[%s164 + $0x28] sm:$0xff] %v312
        %345 = vst [vmem:[%s164 + $0x30] sm:$0xff] %v315
        %346 = vst [vmem:[%s164 + $0x38] sm:$0xff] %v317
        %347 = vst [vmem:[%s164 + $0x40] sm:$0xff] %v320
        %348 = vst [vmem:[%s164 + $0x48] sm:$0xff] %v322
        %349 = vst [vmem:[%s164 + $0x50] sm:$0xff] %v325
        %350 = vst [vmem:[%s164 + $0x58] sm:$0xff] %v327
        %351 = vst [vmem:[%s164 + $0x60] sm:$0xff] %v330
        %352 = vst [vmem:[%s164 + $0x68] sm:$0xff] %v332
        %353 = vst [vmem:[%s164 + $0x70] sm:$0xff] %v335
        %354 = vst [vmem:[%s164 + $0x78] sm:$0xff] %v337
        %s355 = sand.u32 %s93, 1
        %s356 = scalar_lea.sflag [#allocation3], %s355
        %s357 = sand.u32 %s93, 1
        %s358 = smul.addr %s357, 128
        %s359 = scalar_lea.vmem [#allocation2], %s358
        // Predicated region
        $region33: #{tpu_custom_call.1} parent=31 // pred_check
          %p360 = pneg %p103
        $region34: #{tpu_custom_call.1} parent=31 // pred_check_branch
          %362 = sbr.rel (%p360) target = $region36
        $region35: #{tpu_custom_call.1} parent=31 // pred_region
          %s363 = smul.u32 16, %s17
          %365 = vsyncadd %s356, 0
          %s366 = smul.addr %s363, 8
          %s367 = scalar_lea.hbm %s3, %s366
          %s368 = sshll.u32 %s359, 4
          %s369 = int_to_ptr.vmem [resolvable:$true] %s368
          %s370 = sshll.u32 %s367, 4
          %s371 = int_to_ptr.hbm [resolvable:$true] %s370
          %376 = dma.vmem_to_hbm [thread:$0]  %s369, 2048, %s371, %s356, 128, 128, 8
        $region36: #{tpu_custom_call.1} parent=31 // pred_fallthru
          _
      $region32: #{tpu_custom_call.1} parent=5 // pred_fallthru
        _
      %p377 = scmp.le.s32.totalorder 2, %s12
      // Predicated region
      $region37: #{tpu_custom_call.1} parent=5 // pred_check
        %p378 = pneg %p377
      $region38: #{tpu_custom_call.1} parent=5 // pred_check_branch
        %380 = sbr.rel (%p378) target = $region40
      $region39: #{tpu_custom_call.1} parent=5 // pred_region
        %s381 = ssub.s32 %s12, 2
        // Predicated region
        $region41: #{tpu_custom_call.1} parent=39 // pred_check
          %p382 = pneg %p109
        $region42: #{tpu_custom_call.1} parent=39 // pred_check_branch
          %384 = sbr.rel (%p382) target = $region44
        $region43: #{tpu_custom_call.1} parent=39 // pred_region
          %s385 = sand.u32 %s94, 1
          %s386 = scalar_lea.sflag [#allocation3], %s385
          %s387 = sand.u32 %s94, 1
          %s388 = smul.addr %s387, 128
          %s389 = scalar_lea.vmem [#allocation2], %s388
          %391 = dma.done %s386, 2048
        $region44: #{tpu_custom_call.1} parent=39 // pred_fallthru
          _
      $region40: #{tpu_custom_call.1} parent=5 // pred_fallthru
        _
    $region6: #{tpu_custom_call.1} parent=1 // loop_footer
      %s16 = sadd.s32 1, %s12
    $region7: #{tpu_custom_call.1} parent=1 // loop_footer_branch
      %11 = sbr.rel target = $region3
    $region8: #{tpu_custom_call.1} parent=1 // loop_exit
      _
    %392 = vsyncpa [#allocation3], 1
    %s393 = scalar_lea.sflag [#allocation3], 1
    %394 = vsyncpa %s393, 1

</llo_original>
